<compile_context>
chip_gen: v5e
topology: v5e:2x2
jax: 0.10.0
libtpu: 0.0.40
codegen_flags: <defaults>
</compile_context>

<pallas_src>
import jax
import jax.numpy as jnp
import numpy as np
from jax.experimental import pallas as pl
from jax.experimental.pallas import tpu as pltpu

HIDDEN = 32   # hidden_size
INPUT = 64    # input_size (vocab)


def encoder_lstm_kernel(
    tok_ref,     # SMEM (1,) int32         token index
    emb_ref,     # ANY/HBM (INPUT, H) f32  embedding table (never fully DMA'd)
    wih_ref,     # VMEM (H, 4H) bf16       LSTM W_ih pre-transposed, gates (i,f,g,o)
    bias_ref,    # VMEM (1, 4H) f32        b_ih + b_hh pre-summed
    out_ref,     # out VMEM (1, 4H) f32    lanes 0:H hold h1, rest zero
    row_buf,     # scratch VMEM (1, H) f32
    dma_sem,     # scratch DMA semaphore
):
    H = HIDDEN
    tok = tok_ref[0]

    # Gather exactly one embedding row HBM -> VMEM.
    cp = pltpu.make_async_copy(emb_ref.at[pl.ds(tok, 1), :], row_buf, dma_sem)
    cp.start()
    cp.wait()
    x = row_buf[...]                                               # (1, H) f32

    # h0 == c0 == 0: the recurrent dot vanishes; one bf16 MXU dot gives all gates.
    gates = (
        jnp.dot(x.astype(jnp.bfloat16), wih_ref[...],
                preferred_element_type=jnp.float32)
        + bias_ref[...]
    )                                                              # (1, 4H) f32

    sg = jax.nn.sigmoid(gates)          # one EUP pass over the whole gates vreg
    i_g = sg[:, 0:H]
    o_g = sg[:, 3 * H:4 * H]
    g_g = jnp.tanh(gates[:, 2 * H:3 * H])
    # forget gate is dead compute: f * c0 == 0
    c1 = i_g * g_g
    h1 = o_g * jnp.tanh(c1)                                        # (1, H)

    # Single lane-dense (1, 128) store; the wrapper slices lanes 0:H.
    out_ref[...] = jnp.concatenate(
        [h1, jnp.zeros((1, 3 * H), jnp.float32)], axis=1)


def encoder_lstm_forward(tok, params):
    """tok: scalar int32 token index. Returns (output, hn) like the module."""
    H = HIDDEN
    tok_arr = jnp.reshape(tok, (1,)).astype(jnp.int32)

    wih_t = params["w_ih"].T.astype(jnp.bfloat16)                        # (H, 4H)
    bias = (params["b_ih"] + params["b_hh"]).reshape(1, 4 * H).astype(jnp.float32)
    # NOTE: params["w_hh"] is mathematically unused in this forward (h0 == 0),
    # so it is not shipped to the kernel at all.

    slab = pl.pallas_call(
        encoder_lstm_kernel,
        out_shape=jax.ShapeDtypeStruct((1, 4 * H), jnp.float32),
        in_specs=[
            pl.BlockSpec(memory_space=pltpu.MemorySpace.SMEM),   # tok
            pl.BlockSpec(memory_space=pl.ANY),                   # emb stays in HBM
            pl.BlockSpec(memory_space=pltpu.MemorySpace.VMEM),   # W_ih^T (bf16)
            pl.BlockSpec(memory_space=pltpu.MemorySpace.VMEM),   # fused bias
        ],
        out_specs=pl.BlockSpec(memory_space=pltpu.MemorySpace.VMEM),
        scratch_shapes=[
            pltpu.VMEM((1, H), jnp.float32),
            pltpu.SemaphoreType.DMA,
        ],
    )(tok_arr, params["emb"].astype(jnp.float32), wih_t, bias)

    h1 = slab[:, :H]
    out = h1.reshape(1, 1, H)        # LSTM output (batch=1, seq=1, H)
    hn = h1.reshape(1, 1, H)         # final hidden state
    return out, hn


def encoder_lstm_ref(tok, params):
    """Pure-JAX reference, using the same bf16-rounded MXU operands."""
    H = HIDDEN
    x = params["emb"][tok].reshape(1, H)
    wih_t = params["w_ih"].T.astype(jnp.bfloat16).astype(jnp.float32)
    bias = (params["b_ih"] + params["b_hh"]).reshape(1, 4 * H)
    gates = x.astype(jnp.bfloat16).astype(jnp.float32) @ wih_t + bias
    i_g = jax.nn.sigmoid(gates[:, 0:H])
    g_g = jnp.tanh(gates[:, 2 * H:3 * H])
    o_g = jax.nn.sigmoid(gates[:, 3 * H:4 * H])
    h1 = o_g * jnp.tanh(i_g * g_g)
    return h1.reshape(1, 1, H), h1.reshape(1, 1, H)


def init_params(key):
    """Deterministic init mirroring nn.Embedding / nn.LSTM parameter shapes."""
    H = HIDDEN
    ks = jax.random.split(key, 5)
    bound = 1.0 / (H ** 0.5)

    def unif(k, shape):
        return jax.random.uniform(k, shape, jnp.float32, -bound, bound)

    return {
        "emb":  jax.random.normal(ks[0], (INPUT, H), jnp.float32),  # nn.Embedding
        "w_ih": unif(ks[1], (4 * H, H)),   # LSTM weight_ih_l0, gates (i,f,g,o)
        "w_hh": unif(ks[2], (4 * H, H)),   # unused in this forward (h0 == 0)
        "b_ih": unif(ks[3], (4 * H,)),
        "b_hh": unif(ks[4], (4 * H,)),
    }


if __name__ == "__main__":
    key = jax.random.PRNGKey(0)
    params = init_params(key)
    tok = jnp.array(3, dtype=jnp.int32)         # single input token index

    out, hn = encoder_lstm_forward(tok, params)
    jax.block_until_ready((out, hn))

    ref_out, ref_hn = encoder_lstm_ref(tok, params)
    assert out.shape == (1, 1, HIDDEN)
    assert hn.shape == (1, 1, HIDDEN)
    np.testing.assert_allclose(np.asarray(out), np.asarray(ref_out),
                               rtol=1e-4, atol=1e-4)
    np.testing.assert_allclose(np.asarray(hn), np.asarray(ref_hn),
                               rtol=1e-4, atol=1e-4)
    print("KERNEL_OK")
</pallas_src>

<mosaic_0001>
module attributes {stable_mosaic.version = 11 : i64} {
  func.func @encoder_lstm_kernel(%arg0: memref<1xi32, #tpu.memory_space<smem>>, %arg1: memref<64x32xf32, #tpu.memory_space<any>>, %arg2: memref<32x128xbf16, #tpu.memory_space<vmem>>, %arg3: memref<1x128xf32, #tpu.memory_space<vmem>>, %arg4: memref<1x128xf32, #tpu.memory_space<vmem>>, %arg5: memref<1x32xf32, #tpu.memory_space<vmem>>, %arg6: memref<!tpu.dma_semaphore, #tpu.memory_space<semaphore_mem>>) attributes {dimension_semantics = [], scalar_prefetch = 0 : i64, scratch_operands = 2 : i64, tpu.core_type = #tpu.core_type<tc>} {
    %c0 = arith.constant 0 : index
    %0 = memref.load %arg0[%c0] : memref<1xi32, #tpu.memory_space<smem>>
    %c0_i32 = arith.constant 0 : i32
    %1 = tpu.memref_slice %arg1[%0, %c0_i32] : memref<64x32xf32, #tpu.memory_space<any>> -> memref<1x32xf32, #tpu.memory_space<any>>
    tpu.enqueue_dma source(%1 : memref<1x32xf32, #tpu.memory_space<any>>) target(%arg5 : memref<1x32xf32, #tpu.memory_space<vmem>>) target_semaphore(%arg6 : memref<!tpu.dma_semaphore, #tpu.memory_space<semaphore_mem>>)
    %c0_i32_0 = arith.constant 0 : i32
    %2 = tpu.memref_slice %arg1[%0, %c0_i32_0] : memref<64x32xf32, #tpu.memory_space<any>> -> memref<1x32xf32, #tpu.memory_space<any>>
    tpu.wait_dma2 semaphore(%arg6 : memref<!tpu.dma_semaphore, #tpu.memory_space<semaphore_mem>>) src(%2 : memref<1x32xf32, #tpu.memory_space<any>>) dst(%arg5 : memref<1x32xf32, #tpu.memory_space<vmem>>)
    %c0_1 = arith.constant 0 : index
    %c0_2 = arith.constant 0 : index
    %3 = vector.load %arg5[%c0_1, %c0_2] : memref<1x32xf32, #tpu.memory_space<vmem>>, vector<1x32xf32>
    %4 = arith.truncf %3 : vector<1x32xf32> to vector<1x32xbf16>
    %c0_3 = arith.constant 0 : index
    %c0_4 = arith.constant 0 : index
    %5 = vector.load %arg2[%c0_3, %c0_4] : memref<32x128xbf16, #tpu.memory_space<vmem>>, vector<32x128xbf16>
    %cst = arith.constant dense<0.000000e+00> : vector<1x128xf32>
    %6 = tpu.matmul %4, %5, %cst {dimension_numbers = #tpu.dot_dimension_numbers<[1], [0], [0], [1], [0, 0, 1, 1], [], []>} : vector<1x32xbf16>, vector<32x128xbf16>, vector<1x128xf32> -> vector<1x128xf32>
    %c0_5 = arith.constant 0 : index
    %c0_6 = arith.constant 0 : index
    %7 = vector.load %arg3[%c0_5, %c0_6] : memref<1x128xf32, #tpu.memory_space<vmem>>, vector<1x128xf32>
    %8 = arith.addf %6, %7 : vector<1x128xf32>
    %9 = arith.negf %8 : vector<1x128xf32>
    %10 = math.exp %9 : vector<1x128xf32>
    %cst_7 = arith.constant 1.000000e+00 : f32
    %11 = vector.broadcast %cst_7 : f32 to vector<1x128xf32>
    %12 = arith.addf %11, %10 : vector<1x128xf32>
    %13 = arith.divf %11, %12 : vector<1x128xf32>
    %14 = vector.extract_strided_slice %13 {offsets = [0, 0], sizes = [1, 32], strides = [1, 1]} : vector<1x128xf32> to vector<1x32xf32>
    %15 = vector.extract_strided_slice %13 {offsets = [0, 96], sizes = [1, 32], strides = [1, 1]} : vector<1x128xf32> to vector<1x32xf32>
    %16 = vector.extract_strided_slice %8 {offsets = [0, 64], sizes = [1, 32], strides = [1, 1]} : vector<1x128xf32> to vector<1x32xf32>
    %17 = math.tanh %16 : vector<1x32xf32>
    %18 = arith.mulf %14, %17 : vector<1x32xf32>
    %19 = math.tanh %18 : vector<1x32xf32>
    %20 = arith.mulf %15, %19 : vector<1x32xf32>
    %cst_8 = arith.constant 0.000000e+00 : f32
    %21 = vector.broadcast %cst_8 : f32 to vector<1x96xf32>
    %22 = tpu.concatenate %20, %21 in 1 : vector<1x32xf32>, vector<1x96xf32> -> vector<1x128xf32>
    %c0_9 = arith.constant 0 : index
    %c0_10 = arith.constant 0 : index
    %23 = vector.load %arg4[%c0_9, %c0_10] : memref<1x128xf32, #tpu.memory_space<vmem>>, vector<1x128xf32>
    tpu.vector_store %arg4[%c0_9, %c0_10], %22 {strides = array<i32>} : memref<1x128xf32, #tpu.memory_space<vmem>>, vector<1x128xf32>,
    return
  }
}

</mosaic_0001>

<llo_original>
// kernel: tpu_custom_call.1
$region0: #{tpu_custom_call.1}
  #allocation0 [shape = 'u32[]', space=smem, size = 0x4, offset = 0x4, fixed_abs, tag = 'smem constant byte address 0x4 - core index']
  #allocation1 [shape = 'u32[72,128]{1,0:T(1,128)}', space=vmem, size = 0x9000, scoped, tag = 'internal scratch']
  #allocation2 [shape = 'f32[1,32]{1,0:T(1,128)}', space=vmem, size = 0x200, scoped, tag = 'scratch operand']
  #allocation3 [shape = 's32[1]{0}', space=sflag, size = 0x4, scoped, tag = 'scratch operand']
  #allocation4 [shape = 's32[1]{0:T(128)S(6)}', space=smem, size = 0x200, scoped, tag = 'scoped memory for tpu_custom_call.1']
  #allocation7 [shape = 's32[]', space=sflag, size = 0x4, offset = 0, fixed_abs, tag = 'sflag constant byte address 0x0 - dummy sync flag']
  %s0 = inlined_call_operand.<no memory space> [shape: s32[1], index: 0, kind: input, shape index: {}]
  %s1 = inlined_call_operand.vmem [shape: f32[64,32], index: 1, kind: input, shape index: {}]
  %s2 = inlined_call_operand.vmem [shape: bf16[32,128], index: 2, kind: input, shape index: {}]
  %s3 = inlined_call_operand.vmem [shape: f32[1,128], index: 3, kind: input, shape index: {}]
  %s4 = inlined_call_operand.hbm [shape: f32[1,128], index: 4, kind: output, shape index: {}]
  %s5 = sld [smem:[#allocation0]]
  $region52: #{tpu_custom_call.1} parent=0
    _
  %s7 = ssub.s32 1, %s5
  %s8 = scalar_select 0, %s7, %s5
  %9 = sst [smem:[#allocation4]] %s0
  $region1: #{tpu_custom_call.1} parent=0
    #allocation5 [shape = 'u8[512]{0}', space=vmem, size = 0x400, scoped, tag = 'output window, operand 0, single buffered']
    #allocation6 [shape = 's32[1]{0}', space=sflag, size = 0x4, scoped, tag = 'scoped memory for tpu_custom_call.1']
    %10 = vsyncpa [#allocation6], 0
    // Predicated region
    $region2: #{tpu_custom_call.1} parent=1 // pred_check
      _
    $region3: #{tpu_custom_call.1} parent=1 // pred_check_branch
      %12 = sbr.rel (0) target = $region5
    $region4: #{tpu_custom_call.1} parent=1 // pred_region
      _
    $region5: #{tpu_custom_call.1} parent=1 // pred_fallthru
      _
    // Predicated region
    $region6: #{tpu_custom_call.1} parent=1 // pred_check
      _
    $region7: #{tpu_custom_call.1} parent=1 // pred_check_branch
      %14 = sbr.rel (0) target = $region9
    $region8: #{tpu_custom_call.1} parent=1 // pred_region
      _
    $region9: #{tpu_custom_call.1} parent=1 // pred_fallthru
      _
    // Predicated region
    $region10: #{tpu_custom_call.1} parent=1 // pred_check
      _
    $region11: #{tpu_custom_call.1} parent=1 // pred_check_branch
      %16 = sbr.rel (0) target = $region13
    $region12: #{tpu_custom_call.1} parent=1 // pred_region
      _
    $region13: #{tpu_custom_call.1} parent=1 // pred_fallthru
      _
    %s18 = sld [smem:[#allocation4]]
    %s19 = scalar_lea.vmem %s1, %s18
    // Predicated region
    $region14: #{tpu_custom_call.1} parent=1 // pred_check
      _
    $region15: #{tpu_custom_call.1} parent=1 // pred_check_branch
      %21 = sbr.rel target = $region17
    $region16: #{tpu_custom_call.1} parent=1 // pred_region
      // Predicated region
      $region29: #{tpu_custom_call.1} parent=16 // pred_check
        _
      $region30: #{tpu_custom_call.1} parent=16 // pred_check_branch
        %37 = sbr.rel (0) target = $region32
      $region31: #{tpu_custom_call.1} parent=16 // pred_region
        %s39 = ssub.s32 2, 1
        loop: start=0, step=1, limit=1
        $region33: #{tpu_custom_call.1} parent=31 // loop_pre_header
          _
        $region34: #{tpu_custom_call.1} parent=31 // loop_header
          %s41 = sphi 0, %s45
          %p42 = scmp.ge.s32.totalorder %s41, 1
          %s46 = sphi %s19, %s19
          %s47 = sphi [#allocation2], [#allocation2]
        $region35: #{tpu_custom_call.1} parent=31 // loop_header_branch
          %44 = sbr.rel (%p42) target = $region39
        $region36: #{tpu_custom_call.1} parent=31 // loop_body
          %v48 = vld [vmem:[%s46] sm:%s39]
          %49 = vst [vmem:[%s47] sm:%s39] %v48
        $region37: #{tpu_custom_call.1} parent=31 // loop_footer
          %s45 = sadd.s32 1, %s41
        $region38: #{tpu_custom_call.1} parent=31 // loop_footer_branch
          %40 = sbr.rel target = $region34
        $region39: #{tpu_custom_call.1} parent=31 // loop_exit
          _
      $region32: #{tpu_custom_call.1} parent=16 // pred_fallthru
        _
    $region17: #{tpu_custom_call.1} parent=1 // pred_fallthru
      _
    // Predicated region
    $region18: #{tpu_custom_call.1} parent=1 // pred_check
      _
    $region19: #{tpu_custom_call.1} parent=1 // pred_check_branch
      %23 = sbr.rel (0) target = $region21
    $region20: #{tpu_custom_call.1} parent=1 // pred_region
      %s25 = ssub.s32 2, 1
      loop: start=0, step=1, limit=1
      $region22: #{tpu_custom_call.1} parent=20 // loop_pre_header
        _
      $region23: #{tpu_custom_call.1} parent=20 // loop_header
        %s27 = sphi 0, %s31
        %p28 = scmp.ge.s32.totalorder %s27, 1
        %s32 = sphi %s19, %s19
        %s33 = sphi [#allocation2], [#allocation2]
      $region24: #{tpu_custom_call.1} parent=20 // loop_header_branch
        %30 = sbr.rel (%p28) target = $region28
      $region25: #{tpu_custom_call.1} parent=20 // loop_body
        %v34 = vld [vmem:[%s32] sm:%s25]
        %35 = vst [vmem:[%s33] sm:%s25] %v34
      $region26: #{tpu_custom_call.1} parent=20 // loop_footer
        %s31 = sadd.s32 1, %s27
      $region27: #{tpu_custom_call.1} parent=20 // loop_footer_branch
        %26 = sbr.rel target = $region23
      $region28: #{tpu_custom_call.1} parent=20 // loop_exit
        _
    $region21: #{tpu_custom_call.1} parent=1 // pred_fallthru
      _
    // Predicated region
    $region40: #{tpu_custom_call.1} parent=1 // pred_check
      _
    $region41: #{tpu_custom_call.1} parent=1 // pred_check_branch
      %52 = sbr.rel (0) target = $region43
    $region42: #{tpu_custom_call.1} parent=1 // pred_region
      %53 = vsyncadd [#allocation3], 16
    $region43: #{tpu_custom_call.1} parent=1 // pred_fallthru
      _
    %s54 = smul.u32 1, 1
    %s55 = sshll.u32 %s54, 4
    %56 = dma.done [#allocation3], %s55
    %v57 = vld [vmem:[#allocation2] sm:$0x1]
    %v58 = vpack.c.bf16 %v57, %v57
    %v59 = vld [vmem:[%s2] sm:$0xf]
    %v60 = vld [vmem:[%s2 + $0x4] sm:$0xf]
    %v61 = vld [vmem:[%s2 + $0x8] sm:$0xf]
    %v62 = vld [vmem:[%s2 + $0xc] sm:$0xf]
    %v63 = vld [vmem:[%s3] sm:$0x1]
    %v68 = vunpack.c.l.b16 %v59
    %v69 = vunpack.c.l.b16 %v60
    %v70 = vunpack.c.l.b16 %v61
    %v71 = vunpack.c.l.b16 %v62
    %v72 = vpack.c.b16 %v69, %v68
    %v73 = vpack.c.b16 %v71, %v70
    %vm76 = vcmask 261120
    %v78 = vsel %vm76, %v58, 0
    %80 = vmatpush.bf16.msra.mxu0 0
    %81 = vmatpush.bf16.msra.mxu0 0
    %82 = vmatpush.bf16.msra.mxu0 0
    %83 = vmatpush.bf16.msra.mxu0 0
    %84 = vmatpush.bf16.msra.mxu0 0
    %85 = vmatpush.bf16.msra.mxu0 0
    %86 = vmatpush.bf16.msra.mxu0 %v73
    %87 = vmatpush.bf16.msra.mxu0 %v72
    %88 = vmatmul.bf16.gmra.mxu0 %v78
    %v89 = vpop.f32.mrf.mxu0
    %v90 = vadd.f32 %v63, %v89
    %v91 = vpop.f32.mrf.mxu0
    %92 = vdwg.mxu0
    %v93 = vxor.u32 %v90, 2147483648
    %v94 = vmul.f32 %v93, 1.442695
    %v95 = vpow.pop %v94
    %v96 = vadd.f32 %v95, 1.0
    %v97 = vrcp.pop %v96
    %v98 = vmul.f32 %v96, %v97
    %v99 = vsub.f32 1.0, %v98
    %v100 = vmul.f32 %v97, %v99
    %v101 = vadd.f32 %v97, %v100
    %vm102 = vweird.f32 %v96
    %vm103 = vweird.f32 %v97
    %vm104 = vmor %vm102, %vm103
    %v105 = vsel %vm104, %v97, %v101
    %v106 = vand.u32 2147483647, %v96
    %vm107 = vcmp.eq.f32.partialorder %v106, 8.507059e+37
    %v108 = vand.u32 %v96, 2147483648
    %v109 = vor.u32 1.1754944e-38, %v108
    %v110 = vsel %vm107, %v109, %v105
    %v111 = vmul.f32 1.0, %v110
    %v112 = vtanh.pop %v90
    %114 = vrot.lane.b32.xlu0 %v112, 64
    %v115 = vpop.permute.xlu0 %114
    %v117 = vmul.f32 %v111, %v115
    %v118 = vtanh.pop %v117
    %120 = vrot.lane.b32.xlu0 %v118, 96
    %v121 = vpop.permute.xlu0 %120
    %v123 = vmul.f32 %v111, %v121
    %125 = vrot.lane.b32.xlu0 %v123, 32
    %v126 = vpop.permute.xlu0 %125
    %v128 = vsel %vm76, %v126, 0.0
    %129 = vst [vmem:[#allocation5] sm:$0x1] %v128
    // Predicated region
    $region44: #{tpu_custom_call.1} parent=1 // pred_check
      _
    $region45: #{tpu_custom_call.1} parent=1 // pred_check_branch
      %131 = sbr.rel (0) target = $region47
    $region46: #{tpu_custom_call.1} parent=1 // pred_region
      %133 = vsyncadd [#allocation6], 0
      %s135 = sshll.u32 [#allocation5], 4
      %s136 = int_to_ptr.vmem [resolvable:$true] %s135
      %s137 = sshll.u32 %s4, 4
      %s138 = int_to_ptr.hbm [resolvable:$true] %s137
      %140 = dma.vmem_to_hbm [thread:$0]  %s136, 16, %s138, [#allocation6]
    $region47: #{tpu_custom_call.1} parent=1 // pred_fallthru
      _
    // Predicated region
    $region48: #{tpu_custom_call.1} parent=1 // pred_check
      _
    $region49: #{tpu_custom_call.1} parent=1 // pred_check_branch
      %142 = sbr.rel (0) target = $region51
    $region50: #{tpu_custom_call.1} parent=1 // pred_region
      %144 = dma.done [#allocation6], 16
    $region51: #{tpu_custom_call.1} parent=1 // pred_fallthru
      _
    %145 = vsyncpa [#allocation6], 1
  %146 = vsyncmov [#allocation3]
  %s147 = vpop.sfrf %146
  %p148 = scmp.eq.s32.totalorder %s147, 0
  %p149 = pneg %p148
  %151 = shalt.err (%p149)

</llo_original>
